<compile_context>
chip_gen: v5e
topology: v5e:2x2
jax: 0.10.0
libtpu: 0.0.40
codegen_flags: <defaults>
</compile_context>

<pallas_src>
import functools
import math

import jax
import jax.numpy as jnp
from jax.experimental import pallas as pl
from jax.experimental.pallas import tpu as pltpu


def _residual_block_kernel(x_ref, w1_ref, w2_ref, t1_ref, t2_ref, o_ref, *,
                           nb, compute_dtype):
    _, C, L = x_ref.shape

    # Sequence-boundary masks, shared by every item in the block.  The column that wraps
    # around under pltpu.roll is zeroed — exactly the zero padding Conv1d(padding=1) sees.
    # No modulo: every batch item owns a full L axis inside the block.
    pos = jax.lax.broadcasted_iota(jnp.int32, (C, L), 1)
    not_first = pos != 0           # left-neighbour tap invalid at l == 0
    not_last = pos != (L - 1)      # right-neighbour tap invalid at l == L-1

    w1 = w1_ref[...]               # (C, 3C)  BN-scaled, tap-stacked
    w2 = w2_ref[...]
    t1 = t1_ref[...]               # (C, 1)   conv bias + BN shift
    t2 = t2_ref[...]

    def conv3(h, w, t):
        # size-3 / padding-1 conv as a single MXU matmul: stack [h[l-1]; h[l]; h[l+1]]
        # along the contraction axis (rolls run on the XLU slot, which has slack).
        h_m1 = jnp.where(not_first, pltpu.roll(h, shift=1, axis=1), 0.0)       # h[l-1]
        h_p1 = jnp.where(not_last, pltpu.roll(h, shift=L - 1, axis=1), 0.0)    # h[l+1]
        h_stack = jnp.concatenate([h_m1, h, h_p1], axis=0)                     # (3C, L)
        y = jnp.dot(w, h_stack.astype(compute_dtype),
                    preferred_element_type=jnp.float32)
        return y + t               # conv bias + BN shift (BN scale folded into w)

    inv_sqrt2 = 1.0 / math.sqrt(2.0)
    for n in range(nb):            # nb is small and static -> unrolled (LLO visibility)
        h = x_ref[n]               # (C, L)
        y = conv3(h, w1, t1)
        # exact (erf-based) GELU, matching torch.nn.GELU() default
        # (tanh approximation would move this to the EUP; kept exact for parity).
        y = 0.5 * y * (1.0 + jax.lax.erf(y * inv_sqrt2))
        # Dropout layers are identity at inference time.
        z = conv3(y, w2, t2)
        o_ref[n] = h + z           # residual add


def _choose_batch_block(N, C, L, *, max_block_bytes=1 << 20, target_grid=4, max_nb=16):
    """How many whole batch items each grid step processes.

    Policy (per perf review): blocks <= ~1 MiB so double-buffered I/O plus compiler
    temporaries stay well under every generation's scoped VMEM limit, and grid length
    >= min(target_grid, N) so the pipeline overlaps DMA/compute and v7x can shard the
    parallel axis across both TensorCores.  Never produces grid == 1 unless N == 1.
    """
    want_grid = min(target_grid, N)
    nb = 1
    for cand in range(1, min(N, max_nb) + 1):
        if N % cand:
            continue
        if N // cand < want_grid:
            continue
        if 4 * cand * C * L > max_block_bytes:
            continue
        nb = cand
    return nb


def residual_block_forward(x, params, eps=1e-5, use_bf16_matmul=False):
    """x: (N, C, L) float32.  Returns x + net(x) with PyTorch eval-mode semantics."""
    N, C, L = x.shape

    # Fold conv bias + eval-mode BatchNorm into per-output-channel scale/shift, then fold
    # the scale straight into the conv tap matrices (weight-sized ops only, zero per-token
    # HBM cost).
    s1 = params["bn1_gamma"] / jnp.sqrt(params["bn1_var"] + eps)
    t1 = (params["conv1_b"] - params["bn1_mean"]) * s1 + params["bn1_beta"]
    s2 = params["bn2_gamma"] / jnp.sqrt(params["bn2_var"] + eps)
    t2 = (params["conv2_b"] - params["bn2_mean"]) * s2 + params["bn2_beta"]

    # (C_out, C_in, 3) -> (C_out, 3*C_in), stacked so one matmul against
    # [h[l-1]; h[l]; h[l+1]] computes the whole conv.  Rows scaled by the BN scale.
    w_dtype = jnp.bfloat16 if use_bf16_matmul else jnp.float32
    w1 = (jnp.transpose(params["conv1_w"] * s1[:, None, None], (0, 2, 1))
          .reshape(C, 3 * C).astype(w_dtype))
    w2 = (jnp.transpose(params["conv2_w"] * s2[:, None, None], (0, 2, 1))
          .reshape(C, 3 * C).astype(w_dtype))

    nb = _choose_batch_block(N, C, L)
    assert N % nb == 0, "blocks must contain whole batch items (conv boundary masks)"
    grid = N // nb
    # TODO(synk): for very large C*L a further halo-aware tiling of the L axis would be
    # needed to keep single-item blocks within the ~1 MiB budget.

    kernel = functools.partial(_residual_block_kernel, nb=nb, compute_dtype=w_dtype)
    flops = int(2 * 2 * (3 * C) * C * N * L)            # two convs, 3C-deep contraction
    bytes_accessed = int(4 * 2 * N * C * L               # read x + write out
                         + 2 * w1.size * jnp.dtype(w_dtype).itemsize
                         + 4 * 2 * C)

    out = pl.pallas_call(
        kernel,
        out_shape=jax.ShapeDtypeStruct((N, C, L), jnp.float32),
        grid_spec=pltpu.PrefetchScalarGridSpec(
            num_scalar_prefetch=0,
            grid=(grid,),
            in_specs=[
                pl.BlockSpec((nb, C, L), lambda g: (g, 0, 0)),   # x, natural layout
                pl.BlockSpec((C, 3 * C), lambda g: (0, 0)),      # conv1 taps (BN-scaled)
                pl.BlockSpec((C, 3 * C), lambda g: (0, 0)),      # conv2 taps (BN-scaled)
                pl.BlockSpec((C, 1), lambda g: (0, 0)),          # shift1
                pl.BlockSpec((C, 1), lambda g: (0, 0)),          # shift2
            ],
            out_specs=pl.BlockSpec((nb, C, L), lambda g: (g, 0, 0)),
        ),
        compiler_params=pltpu.CompilerParams(
            dimension_semantics=("parallel",)),
        cost_estimate=pl.CostEstimate(
            flops=flops,
            transcendentals=int(N * C * L),
            bytes_accessed=bytes_accessed),
    )(x, w1, w2, t1.reshape(C, 1), t2.reshape(C, 1))
    return out


def reference_forward(x, params, eps=1e-5):
    """Pure-JAX reference mirroring PyTorch eval-mode forward."""
    N, C, L = x.shape

    def conv1d(h, w, b):
        hp = jnp.pad(h, ((0, 0), (0, 0), (1, 1)))
        y = jnp.zeros((N, C, L), jnp.float32)
        for k in range(3):
            y = y + jnp.einsum("oi,nil->nol", w[:, :, k], hp[:, :, k:k + L])
        return y + b[None, :, None]

    def bn(h, gamma, beta, mean, var):
        return ((h - mean[None, :, None]) / jnp.sqrt(var[None, :, None] + eps)
                * gamma[None, :, None] + beta[None, :, None])

    h = conv1d(x, params["conv1_w"], params["conv1_b"])
    h = bn(h, params["bn1_gamma"], params["bn1_beta"],
           params["bn1_mean"], params["bn1_var"])
    h = jax.nn.gelu(h, approximate=False)
    h = conv1d(h, params["conv2_w"], params["conv2_b"])
    h = bn(h, params["bn2_gamma"], params["bn2_beta"],
           params["bn2_mean"], params["bn2_var"])
    return x + h


if __name__ == "__main__":
    N, C, L = 4, 32, 128                                # batch, dim (channels), seq len
    key = jax.random.PRNGKey(0)
    ks = jax.random.split(key, 13)
    fan = 1.0 / math.sqrt(C * 3)                        # torch Conv1d default init bound

    params = {
        "conv1_w": jax.random.uniform(ks[0], (C, C, 3), jnp.float32, -fan, fan),
        "conv1_b": jax.random.uniform(ks[1], (C,), jnp.float32, -fan, fan),
        "bn1_gamma": 1.0 + 0.1 * jax.random.normal(ks[2], (C,), jnp.float32),
        "bn1_beta": 0.1 * jax.random.normal(ks[3], (C,), jnp.float32),
        "bn1_mean": 0.1 * jax.random.normal(ks[4], (C,), jnp.float32),
        "bn1_var": 1.0 + 0.1 * jnp.abs(jax.random.normal(ks[5], (C,), jnp.float32)),
        "conv2_w": jax.random.uniform(ks[6], (C, C, 3), jnp.float32, -fan, fan),
        "conv2_b": jax.random.uniform(ks[7], (C,), jnp.float32, -fan, fan),
        "bn2_gamma": 1.0 + 0.1 * jax.random.normal(ks[8], (C,), jnp.float32),
        "bn2_beta": 0.1 * jax.random.normal(ks[9], (C,), jnp.float32),
        "bn2_mean": 0.1 * jax.random.normal(ks[10], (C,), jnp.float32),
        "bn2_var": 1.0 + 0.1 * jnp.abs(jax.random.normal(ks[11], (C,), jnp.float32)),
    }
    x = jax.random.normal(ks[12], (N, C, L), jnp.float32)

    out = residual_block_forward(x, params)
    jax.block_until_ready(out)

    ref = reference_forward(x, params)
    assert out.shape == (N, C, L)
    assert jnp.allclose(out, ref, atol=1e-4, rtol=1e-4), "kernel/reference mismatch"

    print("KERNEL_OK")
</pallas_src>

<mosaic_0001>
module attributes {stable_mosaic.version = 11 : i64} {
  func.func @_residual_block_kernel(%arg0: i32, %arg1: memref<1x32x128xf32, #tpu.memory_space<vmem>>, %arg2: memref<32x96xf32, #tpu.memory_space<vmem>>, %arg3: memref<32x96xf32, #tpu.memory_space<vmem>>, %arg4: memref<32x1xf32, #tpu.memory_space<vmem>>, %arg5: memref<32x1xf32, #tpu.memory_space<vmem>>, %arg6: memref<1x32x128xf32, #tpu.memory_space<vmem>>) attributes {dimension_semantics = [#tpu.dimension_semantics<parallel>], iteration_bounds = array<i64: 4>, scalar_prefetch = 0 : i64, scratch_operands = 0 : i64, tpu.core_type = #tpu.core_type<tc>, window_params = [{transform_indices = @transform_0, window_bounds = array<i64: 1, 32, 128>}, {pipeline_mode = #tpu.pipeline_mode<synchronous>, transform_indices = @transform_1, window_bounds = array<i64: 32, 96>}, {pipeline_mode = #tpu.pipeline_mode<synchronous>, transform_indices = @transform_2, window_bounds = array<i64: 32, 96>}, {pipeline_mode = #tpu.pipeline_mode<synchronous>, transform_indices = @transform_3, window_bounds = array<i64: 32, 1>}, {pipeline_mode = #tpu.pipeline_mode<synchronous>, transform_indices = @transform_4, window_bounds = array<i64: 32, 1>}, {transform_indices = @transform_5, window_bounds = array<i64: 1, 32, 128>}]} {
    %0 = tpu.iota {dimensions = array<i32: 1>} : vector<32x128xi32>
    %c0_i32 = arith.constant 0 : i32
    %1 = vector.broadcast %c0_i32 : i32 to vector<32x128xi32>
    %2 = arith.cmpi ne, %0, %1 : vector<32x128xi32>
    %c127_i32 = arith.constant 127 : i32
    %3 = vector.broadcast %c127_i32 : i32 to vector<32x128xi32>
    %4 = arith.cmpi ne, %0, %3 : vector<32x128xi32>
    %c0 = arith.constant 0 : index
    %c0_0 = arith.constant 0 : index
    %5 = vector.load %arg2[%c0, %c0_0] : memref<32x96xf32, #tpu.memory_space<vmem>>, vector<32x96xf32>
    %c0_1 = arith.constant 0 : index
    %c0_2 = arith.constant 0 : index
    %6 = vector.load %arg3[%c0_1, %c0_2] : memref<32x96xf32, #tpu.memory_space<vmem>>, vector<32x96xf32>
    %c0_3 = arith.constant 0 : index
    %c0_4 = arith.constant 0 : index
    %7 = vector.load %arg4[%c0_3, %c0_4] : memref<32x1xf32, #tpu.memory_space<vmem>>, vector<32x1xf32>
    %c0_5 = arith.constant 0 : index
    %c0_6 = arith.constant 0 : index
    %8 = vector.load %arg5[%c0_5, %c0_6] : memref<32x1xf32, #tpu.memory_space<vmem>>, vector<32x1xf32>
    %c0_7 = arith.constant 0 : index
    %c0_8 = arith.constant 0 : index
    %c0_9 = arith.constant 0 : index
    %9 = vector.load %arg1[%c0_7, %c0_8, %c0_9] : memref<1x32x128xf32, #tpu.memory_space<vmem>>, vector<1x32x128xf32>
    %10 = vector.shape_cast %9 : vector<1x32x128xf32> to vector<32x128xf32>
    %c1_i32 = arith.constant 1 : i32
    %11 = tpu.dynamic_rotate %10 by %c1_i32 dim 1 : vector<32x128xf32>, i32 -> vector<32x128xf32>
    %cst = arith.constant 0.000000e+00 : f32
    %12 = vector.broadcast %cst : f32 to vector<32x128xf32>
    %13 = arith.select %2, %11, %12 : vector<32x128xi1>, vector<32x128xf32>
    %c127_i32_10 = arith.constant 127 : i32
    %14 = tpu.dynamic_rotate %10 by %c127_i32_10 dim 1 : vector<32x128xf32>, i32 -> vector<32x128xf32>
    %cst_11 = arith.constant 0.000000e+00 : f32
    %15 = vector.broadcast %cst_11 : f32 to vector<32x128xf32>
    %16 = arith.select %4, %14, %15 : vector<32x128xi1>, vector<32x128xf32>
    %17 = tpu.concatenate %13, %10, %16 in 0 : vector<32x128xf32>, vector<32x128xf32>, vector<32x128xf32> -> vector<96x128xf32>
    %cst_12 = arith.constant dense<0.000000e+00> : vector<32x128xf32>
    %18 = tpu.matmul %5, %17, %cst_12 {dimension_numbers = #tpu.dot_dimension_numbers<[1], [0], [0], [1], [0, 0, 1, 1], [], []>} : vector<32x96xf32>, vector<96x128xf32>, vector<32x128xf32> -> vector<32x128xf32>
    %19 = vector.broadcast %7 : vector<32x1xf32> to vector<32x128xf32>
    %20 = arith.addf %18, %19 : vector<32x128xf32>
    %cst_13 = arith.constant 5.000000e-01 : f32
    %21 = vector.broadcast %cst_13 : f32 to vector<32x128xf32>
    %22 = arith.mulf %21, %20 : vector<32x128xf32>
    %cst_14 = arith.constant 0.707106769 : f32
    %23 = vector.broadcast %cst_14 : f32 to vector<32x128xf32>
    %24 = arith.mulf %20, %23 : vector<32x128xf32>
    %25 = math.erf %24 : vector<32x128xf32>
    %cst_15 = arith.constant 1.000000e+00 : f32
    %26 = vector.broadcast %cst_15 : f32 to vector<32x128xf32>
    %27 = arith.addf %26, %25 : vector<32x128xf32>
    %28 = arith.mulf %22, %27 : vector<32x128xf32>
    %c1_i32_16 = arith.constant 1 : i32
    %29 = tpu.dynamic_rotate %28 by %c1_i32_16 dim 1 : vector<32x128xf32>, i32 -> vector<32x128xf32>
    %cst_17 = arith.constant 0.000000e+00 : f32
    %30 = vector.broadcast %cst_17 : f32 to vector<32x128xf32>
    %31 = arith.select %2, %29, %30 : vector<32x128xi1>, vector<32x128xf32>
    %c127_i32_18 = arith.constant 127 : i32
    %32 = tpu.dynamic_rotate %28 by %c127_i32_18 dim 1 : vector<32x128xf32>, i32 -> vector<32x128xf32>
    %cst_19 = arith.constant 0.000000e+00 : f32
    %33 = vector.broadcast %cst_19 : f32 to vector<32x128xf32>
    %34 = arith.select %4, %32, %33 : vector<32x128xi1>, vector<32x128xf32>
    %35 = tpu.concatenate %31, %28, %34 in 0 : vector<32x128xf32>, vector<32x128xf32>, vector<32x128xf32> -> vector<96x128xf32>
    %cst_20 = arith.constant dense<0.000000e+00> : vector<32x128xf32>
    %36 = tpu.matmul %6, %35, %cst_20 {dimension_numbers = #tpu.dot_dimension_numbers<[1], [0], [0], [1], [0, 0, 1, 1], [], []>} : vector<32x96xf32>, vector<96x128xf32>, vector<32x128xf32> -> vector<32x128xf32>
    %37 = vector.broadcast %8 : vector<32x1xf32> to vector<32x128xf32>
    %38 = arith.addf %36, %37 : vector<32x128xf32>
    %39 = arith.addf %10, %38 : vector<32x128xf32>
    %c0_21 = arith.constant 0 : index
    %c0_22 = arith.constant 0 : index
    %c0_23 = arith.constant 0 : index
    %40 = vector.load %arg6[%c0_21, %c0_22, %c0_23] : memref<1x32x128xf32, #tpu.memory_space<vmem>>, vector<1x32x128xf32>
    %41 = vector.shape_cast %40 : vector<1x32x128xf32> to vector<32x128xf32>
    %42 = vector.shape_cast %39 : vector<32x128xf32> to vector<1x32x128xf32>
    tpu.vector_store %arg6[%c0_21, %c0_22, %c0_23], %42 {strides = array<i32>} : memref<1x32x128xf32, #tpu.memory_space<vmem>>, vector<1x32x128xf32>,
    return
  }
  func.func @transform_0(%arg0: i32) -> (i32, i32, i32) {
    %c0_i32 = arith.constant 0 : i32
    %c0_i32_0 = arith.constant 0 : i32
    %c0_i32_1 = arith.constant 0 : i32
    return %arg0, %c0_i32, %c0_i32_0 : i32, i32, i32
  }
  func.func @transform_1(%arg0: i32) -> (i32, i32) {
    %c0_i32 = arith.constant 0 : i32
    %c0_i32_0 = arith.constant 0 : i32
    %c0_i32_1 = arith.constant 0 : i32
    return %c0_i32, %c0_i32_0 : i32, i32
  }
  func.func @transform_2(%arg0: i32) -> (i32, i32) {
    %c0_i32 = arith.constant 0 : i32
    %c0_i32_0 = arith.constant 0 : i32
    %c0_i32_1 = arith.constant 0 : i32
    return %c0_i32, %c0_i32_0 : i32, i32
  }
  func.func @transform_3(%arg0: i32) -> (i32, i32) {
    %c0_i32 = arith.constant 0 : i32
    %c0_i32_0 = arith.constant 0 : i32
    %c0_i32_1 = arith.constant 0 : i32
    return %c0_i32, %c0_i32_0 : i32, i32
  }
  func.func @transform_4(%arg0: i32) -> (i32, i32) {
    %c0_i32 = arith.constant 0 : i32
    %c0_i32_0 = arith.constant 0 : i32
    %c0_i32_1 = arith.constant 0 : i32
    return %c0_i32, %c0_i32_0 : i32, i32
  }
  func.func @transform_5(%arg0: i32) -> (i32, i32, i32) {
    %c0_i32 = arith.constant 0 : i32
    %c0_i32_0 = arith.constant 0 : i32
    %c0_i32_1 = arith.constant 0 : i32
    return %arg0, %c0_i32, %c0_i32_0 : i32, i32, i32
  }
}

</mosaic_0001>

<llo_original>
// kernel: tpu_custom_call.1
$region0: #{tpu_custom_call.1}
  #allocation0 [shape = 'u32[]', space=smem, size = 0x4, offset = 0x4, fixed_abs, tag = 'smem constant byte address 0x4 - core index']
  #allocation1 [shape = 'u32[72,128]{1,0:T(1,128)}', space=vmem, size = 0x9000, scoped, tag = 'internal scratch']
  %s0 = inlined_call_operand.hbm [shape: f32[4,32,128], index: 0, kind: input, shape index: {}]
  %s1 = inlined_call_operand.vmem [shape: f32[32,96], index: 1, kind: input, shape index: {}]
  %s2 = inlined_call_operand.vmem [shape: f32[32,96], index: 2, kind: input, shape index: {}]
  %s3 = inlined_call_operand.vmem [shape: f32[32,1], index: 3, kind: input, shape index: {}]
  %s4 = inlined_call_operand.vmem [shape: f32[32,1], index: 4, kind: input, shape index: {}]
  %s5 = inlined_call_operand.hbm [shape: f32[4,32,128], index: 5, kind: output, shape index: {}]
  %s6 = sld [smem:[#allocation0]]
  $region57: #{tpu_custom_call.1} parent=0
    _
  %s8 = ssub.s32 1, %s6
  %s9 = scalar_select 0, %s8, %s6
  $region1: #{tpu_custom_call.1} parent=0
    #allocation2 [shape = 'u8[32768]{0}', space=vmem, size = 0x8000, scoped, tag = 'input window, operand 0']
    #allocation3 [shape = 's32[2]{0}', space=sflag, size = 0x8, scoped, tag = 'scoped memory for tpu_custom_call.1']
    #allocation4 [shape = 's32[2]{0}', space=sflag, size = 0x8, scoped, tag = 'scoped memory for tpu_custom_call.1']
    #allocation5 [shape = 'u8[32768]{0}', space=vmem, size = 0x8000, scoped, tag = 'output window, operand 0']
    %10 = vsyncpa [#allocation3], 0
    %s11 = scalar_lea.sflag [#allocation3], 1
    %12 = vsyncpa %s11, 0
    %13 = vsyncpa [#allocation4], 0
    %s14 = scalar_lea.sflag [#allocation4], 1
    %15 = vsyncpa %s14, 0
    loop: start=0, step=1, limit=6
    $region2: #{tpu_custom_call.1} parent=1 // loop_pre_header
      _
    $region3: #{tpu_custom_call.1} parent=1 // loop_header
      %s17 = sphi 0, %s21
      %p18 = scmp.ge.s32.totalorder %s17, 6
      %s27 = sphi 0, %s29
      %s30 = sphi 0, %s27
      %s31 = sphi 0, %s30
      %s47 = sphi 0, %s31
      %s51 = sphi 0, %s51
      %s53 = sphi 0, %s51
      %s54 = sphi 0, %s53
      %s68 = sphi 0, %s54
      %s72 = sphi 0, %s72
      %s74 = sphi 0, %s72
      %s75 = sphi 0, %s74
      %s89 = sphi 0, %s75
      %s93 = sphi 0, %s93
      %s95 = sphi 0, %s93
      %s96 = sphi 0, %s95
      %s110 = sphi 0, %s96
      %s114 = sphi 0, %s114
      %s116 = sphi 0, %s114
      %s117 = sphi 0, %s116
      %s131 = sphi 0, %s117
      %s137 = sphi 0, %s139
      %s140 = sphi 0, %s137
      %s141 = sphi 0, %s140
      %s157 = sphi 0, %s141
    $region4: #{tpu_custom_call.1} parent=1 // loop_header_branch
      %20 = sbr.rel (%p18) target = $region8
    $region5: #{tpu_custom_call.1} parent=1 // loop_body
      %s22 = ssub.s32 %s17, 1
      %s23 = ssub.s32 %s17, 2
      %s24 = sadd.s32 %s17, 1
      %s25 = ssub.s32 %s17, %s24
      %p26 = scmp.eq.s32.totalorder %s25, 0
      %s28 = sadd.s32 %s27, 1
      %s29 = scalar_select %p26, %s27, %s28
      %p32 = pneg %p26
      %p33 = scmp.eq.s32.totalorder %s17, 3
      %p34 = por %p32, %p33
      %p35 = scmp.ne.s32.totalorder %s27, %s30
      %p36 = scmp.eq.s32.totalorder %s17, 0
      %p37 = por %p35, %p36
      %p38 = scmp.ne.s32.totalorder %s27, %s30
      %p39 = scmp.eq.s32.totalorder %s22, 3
      %p40 = por %p38, %p39
      %p41 = scmp.ne.s32.totalorder %s30, %s31
      %p42 = scmp.eq.s32.totalorder %s22, 0
      %p43 = por %p41, %p42
      %p44 = scmp.ne.s32.totalorder %s30, %s31
      %p45 = scmp.eq.s32.totalorder %s23, 3
      %p46 = por %p44, %p45
      %p48 = scmp.ne.s32.totalorder %s31, %s47
      %p49 = scmp.eq.s32.totalorder %s23, 0
      %p50 = por %p48, %p49
      %s52 = sadd.s32 %s51, 1
      %p55 = scmp.eq.s32.totalorder %s17, 3
      %p56 = scmp.ne.s32.totalorder %s51, %s53
      %p57 = scmp.eq.s32.totalorder %s17, 0
      %p58 = por %p56, %p57
      %p59 = scmp.ne.s32.totalorder %s51, %s53
      %p60 = scmp.eq.s32.totalorder %s22, 3
      %p61 = por %p59, %p60
      %p62 = scmp.ne.s32.totalorder %s53, %s54
      %p63 = scmp.eq.s32.totalorder %s22, 0
      %p64 = por %p62, %p63
      %p65 = scmp.ne.s32.totalorder %s53, %s54
      %p66 = scmp.eq.s32.totalorder %s23, 3
      %p67 = por %p65, %p66
      %p69 = scmp.ne.s32.totalorder %s54, %s68
      %p70 = scmp.eq.s32.totalorder %s23, 0
      %p71 = por %p69, %p70
      %s73 = sadd.s32 %s72, 1
      %p76 = scmp.eq.s32.totalorder %s17, 3
      %p77 = scmp.ne.s32.totalorder %s72, %s74
      %p78 = scmp.eq.s32.totalorder %s17, 0
      %p79 = por %p77, %p78
      %p80 = scmp.ne.s32.totalorder %s72, %s74
      %p81 = scmp.eq.s32.totalorder %s22, 3
      %p82 = por %p80, %p81
      %p83 = scmp.ne.s32.totalorder %s74, %s75
      %p84 = scmp.eq.s32.totalorder %s22, 0
      %p85 = por %p83, %p84
      %p86 = scmp.ne.s32.totalorder %s74, %s75
      %p87 = scmp.eq.s32.totalorder %s23, 3
      %p88 = por %p86, %p87
      %p90 = scmp.ne.s32.totalorder %s75, %s89
      %p91 = scmp.eq.s32.totalorder %s23, 0
      %p92 = por %p90, %p91
      %s94 = sadd.s32 %s93, 1
      %p97 = scmp.eq.s32.totalorder %s17, 3
      %p98 = scmp.ne.s32.totalorder %s93, %s95
      %p99 = scmp.eq.s32.totalorder %s17, 0
      %p100 = por %p98, %p99
      %p101 = scmp.ne.s32.totalorder %s93, %s95
      %p102 = scmp.eq.s32.totalorder %s22, 3
      %p103 = por %p101, %p102
      %p104 = scmp.ne.s32.totalorder %s95, %s96
      %p105 = scmp.eq.s32.totalorder %s22, 0
      %p106 = por %p104, %p105
      %p107 = scmp.ne.s32.totalorder %s95, %s96
      %p108 = scmp.eq.s32.totalorder %s23, 3
      %p109 = por %p107, %p108
      %p111 = scmp.ne.s32.totalorder %s96, %s110
      %p112 = scmp.eq.s32.totalorder %s23, 0
      %p113 = por %p111, %p112
      %s115 = sadd.s32 %s114, 1
      %p118 = scmp.eq.s32.totalorder %s17, 3
      %p119 = scmp.ne.s32.totalorder %s114, %s116
      %p120 = scmp.eq.s32.totalorder %s17, 0
      %p121 = por %p119, %p120
      %p122 = scmp.ne.s32.totalorder %s114, %s116
      %p123 = scmp.eq.s32.totalorder %s22, 3
      %p124 = por %p122, %p123
      %p125 = scmp.ne.s32.totalorder %s116, %s117
      %p126 = scmp.eq.s32.totalorder %s22, 0
      %p127 = por %p125, %p126
      %p128 = scmp.ne.s32.totalorder %s116, %s117
      %p129 = scmp.eq.s32.totalorder %s23, 3
      %p130 = por %p128, %p129
      %p132 = scmp.ne.s32.totalorder %s117, %s131
      %p133 = scmp.eq.s32.totalorder %s23, 0
      %p134 = por %p132, %p133
      %s135 = ssub.s32 %s17, %s24
      %p136 = scmp.eq.s32.totalorder %s135, 0
      %s138 = sadd.s32 %s137, 1
      %s139 = scalar_select %p136, %s137, %s138
      %p142 = pneg %p136
      %p143 = scmp.eq.s32.totalorder %s17, 3
      %p144 = por %p142, %p143
      %p145 = scmp.ne.s32.totalorder %s137, %s140
      %p146 = scmp.eq.s32.totalorder %s17, 0
      %p147 = por %p145, %p146
      %p148 = scmp.ne.s32.totalorder %s137, %s140
      %p149 = scmp.eq.s32.totalorder %s22, 3
      %p150 = por %p148, %p149
      %p151 = scmp.ne.s32.totalorder %s140, %s141
      %p152 = scmp.eq.s32.totalorder %s22, 0
      %p153 = por %p151, %p152
      %p154 = scmp.ne.s32.totalorder %s140, %s141
      %p155 = scmp.eq.s32.totalorder %s23, 3
      %p156 = por %p154, %p155
      %p158 = scmp.ne.s32.totalorder %s141, %s157
      %p159 = scmp.eq.s32.totalorder %s23, 0
      %p160 = por %p158, %p159
      %p161 = scmp.le.s32.totalorder 1, %s17
      %p162 = scmp.lt.s32.totalorder %s17, 5
      %p163 = pnand %p161, %p162
      %p164 = pneg %p163
      // Predicated region
      $region9: #{tpu_custom_call.1} parent=5 // pred_check
        _
      $region10: #{tpu_custom_call.1} parent=5 // pred_check_branch
        %166 = sbr.rel (%p163) target = $region12
      $region11: #{tpu_custom_call.1} parent=5 // pred_region
        %s167 = ssub.s32 %s17, 1
        // Predicated region
        $region13: #{tpu_custom_call.1} parent=11 // pred_check
          %p168 = pneg %p64
        $region14: #{tpu_custom_call.1} parent=11 // pred_check_branch
          %170 = sbr.rel (%p168) target = $region16
        $region15: #{tpu_custom_call.1} parent=11 // pred_region
          _
        $region16: #{tpu_custom_call.1} parent=11 // pred_fallthru
          _
        // Predicated region
        $region17: #{tpu_custom_call.1} parent=11 // pred_check
          %p171 = pneg %p85
        $region18: #{tpu_custom_call.1} parent=11 // pred_check_branch
          %173 = sbr.rel (%p171) target = $region20
        $region19: #{tpu_custom_call.1} parent=11 // pred_region
          _
        $region20: #{tpu_custom_call.1} parent=11 // pred_fallthru
          _
        // Predicated region
        $region21: #{tpu_custom_call.1} parent=11 // pred_check
          %p174 = pneg %p106
        $region22: #{tpu_custom_call.1} parent=11 // pred_check_branch
          %176 = sbr.rel (%p174) target = $region24
        $region23: #{tpu_custom_call.1} parent=11 // pred_region
          _
        $region24: #{tpu_custom_call.1} parent=11 // pred_fallthru
          _
        // Predicated region
        $region25: #{tpu_custom_call.1} parent=11 // pred_check
          %p177 = pneg %p127
        $region26: #{tpu_custom_call.1} parent=11 // pred_check_branch
          %179 = sbr.rel (%p177) target = $region28
        $region27: #{tpu_custom_call.1} parent=11 // pred_region
          _
        $region28: #{tpu_custom_call.1} parent=11 // pred_fallthru
          _
      $region12: #{tpu_custom_call.1} parent=5 // pred_fallthru
        _
      %p180 = scmp.lt.s32.totalorder %s17, 4
      // Predicated region
      $region29: #{tpu_custom_call.1} parent=5 // pred_check
        %p181 = pneg %p180
      $region30: #{tpu_custom_call.1} parent=5 // pred_check_branch
        %183 = sbr.rel (%p181) target = $region32
      $region31: #{tpu_custom_call.1} parent=5 // pred_region
        // Predicated region
        $region33: #{tpu_custom_call.1} parent=31 // pred_check
          %p184 = pneg %p37
        $region34: #{tpu_custom_call.1} parent=31 // pred_check_branch
          %186 = sbr.rel (%p184) target = $region36
        $region35: #{tpu_custom_call.1} parent=31 // pred_region
          %s187 = sand.u32 %s27, 1
          %s188 = scalar_lea.sflag [#allocation3], %s187
          %s189 = sand.u32 %s27, 1
          %s190 = smul.addr %s189, 32
          %s191 = scalar_lea.vmem [#allocation2], %s190
          %193 = vsyncadd %s188, 0
          %s194 = smul.addr %s17, 4
          %s195 = smul.addr %s194, 8
          %s196 = scalar_lea.hbm %s0, %s195
          %s197 = sshll.u32 %s196, 4
          %s198 = int_to_ptr.hbm [resolvable:$true] %s197
          %s199 = sshll.u32 %s191, 4
          %s200 = int_to_ptr.vmem [resolvable:$true] %s199
          %205 = dma.hbm_to_vmem [thread:$0]  %s198, 512, %s200, %s188, 128, 128, 8
        $region36: #{tpu_custom_call.1} parent=31 // pred_fallthru
          _
      $region32: #{tpu_custom_call.1} parent=5 // pred_fallthru
        _
      %p206 = scmp.le.s32.totalorder 1, %s17
      %p207 = scmp.lt.s32.totalorder %s17, 5
      %p208 = pnand %p206, %p207
      %p209 = pneg %p208
      // Predicated region
      $region37: #{tpu_custom_call.1} parent=5 // pred_check
        _
      $region38: #{tpu_custom_call.1} parent=5 // pred_check_branch
        %211 = sbr.rel (%p208) target = $region40
      $region39: #{tpu_custom_call.1} parent=5 // pred_region
        %s212 = ssub.s32 %s17, 1
        %s213 = sand.u32 %s30, 1
        %s214 = scalar_lea.sflag [#allocation3], %s213
        %s215 = sand.u32 %s30, 1
        %s216 = smul.addr %s215, 32
        %s217 = scalar_lea.vmem [#allocation2], %s216
        // Predicated region
        $region41: #{tpu_custom_call.1} parent=39 // pred_check
          %p218 = pneg %p43
        $region42: #{tpu_custom_call.1} parent=39 // pred_check_branch
          %220 = sbr.rel (%p218) target = $region44
        $region43: #{tpu_custom_call.1} parent=39 // pred_region
          %222 = dma.done %s214, 512
        $region44: #{tpu_custom_call.1} parent=39 // pred_fallthru
          _
        %s223 = sand.u32 %s30, 1
        %s224 = scalar_lea.sflag [#allocation3], %s223
        %s225 = sand.u32 %s30, 1
        %s226 = smul.addr %s225, 32
        %s227 = scalar_lea.vmem [#allocation2], %s226
        %p228 = pneg %p43
        %p229 = pneg %p40
        %p230 = pneg %p64
        %p231 = pneg %p61
        %p232 = pneg %p85
        %p233 = pneg %p82
        %p234 = pneg %p106
        %p235 = pneg %p103
        %p236 = pneg %p127
        %p237 = pneg %p124
        %p238 = pneg %p153
        %p239 = pneg %p150
        %s240 = sand.u32 %s140, 1
        %s241 = scalar_lea.sflag [#allocation4], %s240
        %s242 = sand.u32 %s140, 1
        %s243 = smul.addr %s242, 32
        %s244 = scalar_lea.vmem [#allocation5], %s243
        %v245 = vlaneseq
        %v246 = vand.u32 %v245, 127
        %vm247 = vcmp.ne.s32.totalorder %v246, 0
        %vm248 = vcmp.ne.s32.totalorder %v246, 127
        %v249 = vld [vmem:[%s1] sm:$0xff]
        %v250 = vld [vmem:[%s1 + $0x8] sm:$0xff]
        %v251 = vld [vmem:[%s1 + $0x10] sm:$0xff]
        %v252 = vld [vmem:[%s1 + $0x18] sm:$0xff]
        %v253 = vld [vmem:[%s2] sm:$0xff]
        %v254 = vld [vmem:[%s2 + $0x8] sm:$0xff]
        %v255 = vld [vmem:[%s2 + $0x10] sm:$0xff]
        %v256 = vld [vmem:[%s2 + $0x18] sm:$0xff]
        %v257 = vld [vmem:[%s3] sm:$0xff]
        %v258 = vld [vmem:[%s3 + $0x8] sm:$0xff]
        %v259 = vld [vmem:[%s3 + $0x10] sm:$0xff]
        %v260 = vld [vmem:[%s3 + $0x18] sm:$0xff]
        %v261 = vld [vmem:[%s4] sm:$0xff]
        %v262 = vld [vmem:[%s4 + $0x8] sm:$0xff]
        %v263 = vld [vmem:[%s4 + $0x10] sm:$0xff]
        %v264 = vld [vmem:[%s4 + $0x18] sm:$0xff]
        %v265 = vld [vmem:[%s217] sm:$0xff]
        %v266 = vld [vmem:[%s217 + $0x8] sm:$0xff]
        %v267 = vld [vmem:[%s217 + $0x10] sm:$0xff]
        %v268 = vld [vmem:[%s217 + $0x18] sm:$0xff]
        %269 = vrot.lane.b32.xlu0 %v265, 1
        %v270 = vpop.permute.xlu0 %269
        %271 = vrot.lane.b32.xlu0 %v266, 1
        %v272 = vpop.permute.xlu0 %271
        %273 = vrot.lane.b32.xlu0 %v267, 1
        %v274 = vpop.permute.xlu0 %273
        %275 = vrot.lane.b32.xlu0 %v268, 1
        %v276 = vpop.permute.xlu0 %275
        %v277 = vsel %vm247, %v270, 0.0
        %v278 = vsel %vm247, %v272, 0.0
        %v279 = vsel %vm247, %v274, 0.0
        %v280 = vsel %vm247, %v276, 0.0
        %281 = vrot.lane.b32.xlu0 %v265, 127
        %v282 = vpop.permute.xlu0 %281
        %283 = vrot.lane.b32.xlu0 %v266, 127
        %v284 = vpop.permute.xlu0 %283
        %285 = vrot.lane.b32.xlu0 %v267, 127
        %v286 = vpop.permute.xlu0 %285
        %287 = vrot.lane.b32.xlu0 %v268, 127
        %v288 = vpop.permute.xlu0 %287
        %v289 = vsel %vm248, %v282, 0.0
        %v290 = vsel %vm248, %v284, 0.0
        %v291 = vsel %vm248, %v286, 0.0
        %v292 = vsel %vm248, %v288, 0.0
        %294 = vset.pattern.permute.xlu0 0
        %295 = vperm.xlu0 %294, %v257
        %v296 = vpop.permute.xlu0 %295
        %299 = vset.pattern.permute.xlu0 0
        %300 = vperm.xlu0 %299, %v258
        %v301 = vpop.permute.xlu0 %300
        %304 = vset.pattern.permute.xlu0 0
        %305 = vperm.xlu0 %304, %v259
        %v306 = vpop.permute.xlu0 %305
        %309 = vset.pattern.permute.xlu0 0
        %310 = vperm.xlu0 %309, %v260
        %v311 = vpop.permute.xlu0 %310
        %vm313 = vcmask 785408
        %v315 = vsel %vm313, %v249, 0
        %v318 = vsel %vm313, %v250, 0
        %v321 = vsel %vm313, %v251, 0
        %v324 = vsel %vm313, %v252, 0
        %326 = vmatpush.msra.mxu0 0.0
        %327 = vmatpush.msra.mxu0 0.0
        %328 = vmatpush.msra.mxu0 0.0
        %329 = vmatpush.msra.mxu0 0.0
        %330 = vmatpush.msra.mxu0 %v292
        %331 = vmatpush.msra.mxu0 %v291
        %332 = vmatpush.msra.mxu0 %v290
        %333 = vmatpush.msra.mxu0 %v289
        %334 = vmatpush.msra.mxu0 %v268
        %335 = vmatpush.msra.mxu0 %v267
        %336 = vmatpush.msra.mxu0 %v266
        %337 = vmatpush.msra.mxu0 %v265
        %338 = vmatpush.msra.mxu0 %v280
        %339 = vmatpush.msra.mxu0 %v279
        %340 = vmatpush.msra.mxu0 %v278
        %341 = vmatpush.msra.mxu0 %v277
        %342 = vmatmul.f32.gmra.mxu0 %v315
        %v343 = vpop.f32.mrf.mxu0
        %v344 = vadd.f32 %v296, %v343
        %345 = vmatmul.f32.gmra.mxu0 %v318
        %v346 = vpop.f32.mrf.mxu0
        %v347 = vadd.f32 %v301, %v346
        %348 = vmatmul.f32.gmra.mxu0 %v321
        %v349 = vpop.f32.mrf.mxu0
        %v350 = vadd.f32 %v306, %v349
        %351 = vmatmul.f32.gmra.mxu0 %v324
        %v352 = vpop.f32.mrf.mxu0
        %v353 = vadd.f32 %v311, %v352
        %354 = vdwg.mxu0
        %v355 = vmul.f32 %v344, 0.5
        %v356 = vmul.f32 %v347, 0.5
        %v357 = vmul.f32 %v350, 0.5
        %v358 = vmul.f32 %v353, 0.5
        %v359 = vmul.f32 %v344, 0.70710677
        %v360 = vmul.f32 %v347, 0.70710677
        %v361 = vmul.f32 %v350, 0.70710677
        %v362 = vmul.f32 %v353, 0.70710677
        %v363 = vmul.f32 %v359, %v359
        %v364 = vmin.f32 16.0, %v363
        %v365 = vmul.f32 %v364, 2.1237322e-06
        %v366 = vadd.f32 %v365, 0.00028619796
        %v367 = vmul.f32 %v364, %v366
        %v368 = vadd.f32 %v367, 0.0036580483
        %v369 = vmul.f32 %v364, %v368
        %v370 = vadd.f32 %v369, 0.05243302
        %v371 = vmul.f32 %v364, %v370
        %v372 = vadd.f32 %v371, 0.18741608
        %v373 = vmul.f32 %v364, %v372
        %v374 = vadd.f32 %v373, 1.1283791
        %v375 = vmul.f32 %v359, %v374
        %v376 = vmul.f32 %v364, 3.8918573e-05
        %v377 = vadd.f32 %v376, 0.001143296
        %v378 = vmul.f32 %v364, %v377
        %v379 = vadd.f32 %v378, 0.014752088
        %v380 = vmul.f32 %v364, %v379
        %v381 = vadd.f32 %v380, 0.112945676
        %v382 = vmul.f32 %v364, %v381
        %v383 = vadd.f32 %v382, 0.4994258
        %v384 = vmul.f32 %v364, %v383
        %v385 = vadd.f32 %v384, 1.0
        %v386 = vrcp.pop %v385
        %v387 = vmul.f32 %v385, %v386
        %v388 = vsub.f32 1.0, %v387
        %v389 = vmul.f32 %v386, %v388
        %v390 = vadd.f32 %v386, %v389
        %vm391 = vweird.f32 %v385
        %vm392 = vweird.f32 %v386
        %vm393 = vmor %vm391, %vm392
        %v394 = vsel %vm393, %v386, %v390
        %v395 = vand.u32 2147483647, %v385
        %vm396 = vcmp.eq.f32.partialorder %v395, 8.507059e+37
        %v397 = vand.u32 %v385, 2147483648
        %v398 = vor.u32 1.1754944e-38, %v397
        %v399 = vsel %vm396, %v398, %v394
        %v400 = vmul.f32 %v375, %v399
        %v401 = vmin.f32 %v400, 1.0
        %v402 = vmax.f32 %v401, -1.0
        %v403 = vmul.f32 %v360, %v360
        %v404 = vmin.f32 16.0, %v403
        %v405 = vmul.f32 %v404, 2.1237322e-06
        %v406 = vadd.f32 %v405, 0.00028619796
        %v407 = vmul.f32 %v404, %v406
        %v408 = vadd.f32 %v407, 0.0036580483
        %v409 = vmul.f32 %v404, %v408
        %v410 = vadd.f32 %v409, 0.05243302
        %v411 = vmul.f32 %v404, %v410
        %v412 = vadd.f32 %v411, 0.18741608
        %v413 = vmul.f32 %v404, %v412
        %v414 = vadd.f32 %v413, 1.1283791
        %v415 = vmul.f32 %v360, %v414
        %v416 = vmul.f32 %v404, 3.8918573e-05
        %v417 = vadd.f32 %v416, 0.001143296
        %v418 = vmul.f32 %v404, %v417
        %v419 = vadd.f32 %v418, 0.014752088
        %v420 = vmul.f32 %v404, %v419
        %v421 = vadd.f32 %v420, 0.112945676
        %v422 = vmul.f32 %v404, %v421
        %v423 = vadd.f32 %v422, 0.4994258
        %v424 = vmul.f32 %v404, %v423
        %v425 = vadd.f32 %v424, 1.0
        %v426 = vrcp.pop %v425
        %v427 = vmul.f32 %v425, %v426
        %v428 = vsub.f32 1.0, %v427
        %v429 = vmul.f32 %v426, %v428
        %v430 = vadd.f32 %v426, %v429
        %vm431 = vweird.f32 %v425
        %vm432 = vweird.f32 %v426
        %vm433 = vmor %vm431, %vm432
        %v434 = vsel %vm433, %v426, %v430
        %v435 = vand.u32 2147483647, %v425
        %vm436 = vcmp.eq.f32.partialorder %v435, 8.507059e+37
        %v437 = vand.u32 %v425, 2147483648
        %v438 = vor.u32 1.1754944e-38, %v437
        %v439 = vsel %vm436, %v438, %v434
        %v440 = vmul.f32 %v415, %v439
        %v441 = vmin.f32 %v440, 1.0
        %v442 = vmax.f32 %v441, -1.0
        %v443 = vmul.f32 %v361, %v361
        %v444 = vmin.f32 16.0, %v443
        %v445 = vmul.f32 %v444, 2.1237322e-06
        %v446 = vadd.f32 %v445, 0.00028619796
        %v447 = vmul.f32 %v444, %v446
        %v448 = vadd.f32 %v447, 0.0036580483
        %v449 = vmul.f32 %v444, %v448
        %v450 = vadd.f32 %v449, 0.05243302
        %v451 = vmul.f32 %v444, %v450
        %v452 = vadd.f32 %v451, 0.18741608
        %v453 = vmul.f32 %v444, %v452
        %v454 = vadd.f32 %v453, 1.1283791
        %v455 = vmul.f32 %v361, %v454
        %v456 = vmul.f32 %v444, 3.8918573e-05
        %v457 = vadd.f32 %v456, 0.001143296
        %v458 = vmul.f32 %v444, %v457
        %v459 = vadd.f32 %v458, 0.014752088
        %v460 = vmul.f32 %v444, %v459
        %v461 = vadd.f32 %v460, 0.112945676
        %v462 = vmul.f32 %v444, %v461
        %v463 = vadd.f32 %v462, 0.4994258
        %v464 = vmul.f32 %v444, %v463
        %v465 = vadd.f32 %v464, 1.0
        %v466 = vrcp.pop %v465
        %v467 = vmul.f32 %v465, %v466
        %v468 = vsub.f32 1.0, %v467
        %v469 = vmul.f32 %v466, %v468
        %v470 = vadd.f32 %v466, %v469
        %vm471 = vweird.f32 %v465
        %vm472 = vweird.f32 %v466
        %vm473 = vmor %vm471, %vm472
        %v474 = vsel %vm473, %v466, %v470
        %v475 = vand.u32 2147483647, %v465
        %vm476 = vcmp.eq.f32.partialorder %v475, 8.507059e+37
        %v477 = vand.u32 %v465, 2147483648
        %v478 = vor.u32 1.1754944e-38, %v477
        %v479 = vsel %vm476, %v478, %v474
        %v480 = vmul.f32 %v455, %v479
        %v481 = vmin.f32 %v480, 1.0
        %v482 = vmax.f32 %v481, -1.0
        %v483 = vmul.f32 %v362, %v362
        %v484 = vmin.f32 16.0, %v483
        %v485 = vmul.f32 %v484, 2.1237322e-06
        %v486 = vadd.f32 %v485, 0.00028619796
        %v487 = vmul.f32 %v484, %v486
        %v488 = vadd.f32 %v487, 0.0036580483
        %v489 = vmul.f32 %v484, %v488
        %v490 = vadd.f32 %v489, 0.05243302
        %v491 = vmul.f32 %v484, %v490
        %v492 = vadd.f32 %v491, 0.18741608
        %v493 = vmul.f32 %v484, %v492
        %v494 = vadd.f32 %v493, 1.1283791
        %v495 = vmul.f32 %v362, %v494
        %v496 = vmul.f32 %v484, 3.8918573e-05
        %v497 = vadd.f32 %v496, 0.001143296
        %v498 = vmul.f32 %v484, %v497
        %v499 = vadd.f32 %v498, 0.014752088
        %v500 = vmul.f32 %v484, %v499
        %v501 = vadd.f32 %v500, 0.112945676
        %v502 = vmul.f32 %v484, %v501
        %v503 = vadd.f32 %v502, 0.4994258
        %v504 = vmul.f32 %v484, %v503
        %v505 = vadd.f32 %v504, 1.0
        %v506 = vrcp.pop %v505
        %v507 = vmul.f32 %v505, %v506
        %v508 = vsub.f32 1.0, %v507
        %v509 = vmul.f32 %v506, %v508
        %v510 = vadd.f32 %v506, %v509
        %vm511 = vweird.f32 %v505
        %vm512 = vweird.f32 %v506
        %vm513 = vmor %vm511, %vm512
        %v514 = vsel %vm513, %v506, %v510
        %v515 = vand.u32 2147483647, %v505
        %vm516 = vcmp.eq.f32.partialorder %v515, 8.507059e+37
        %v517 = vand.u32 %v505, 2147483648
        %v518 = vor.u32 1.1754944e-38, %v517
        %v519 = vsel %vm516, %v518, %v514
        %v520 = vmul.f32 %v495, %v519
        %v521 = vmin.f32 %v520, 1.0
        %v522 = vmax.f32 %v521, -1.0
        %v523 = vadd.f32 %v402, 1.0
        %v524 = vadd.f32 %v442, 1.0
        %v525 = vadd.f32 %v482, 1.0
        %v526 = vadd.f32 %v522, 1.0
        %v527 = vmul.f32 %v355, %v523
        %v528 = vmul.f32 %v356, %v524
        %v529 = vmul.f32 %v357, %v525
        %v530 = vmul.f32 %v358, %v526
        %531 = vrot.lane.b32.xlu0 %v527, 1
        %v532 = vpop.permute.xlu0 %531
        %533 = vrot.lane.b32.xlu0 %v528, 1
        %v534 = vpop.permute.xlu0 %533
        %535 = vrot.lane.b32.xlu0 %v529, 1
        %v536 = vpop.permute.xlu0 %535
        %537 = vrot.lane.b32.xlu0 %v530, 1
        %v538 = vpop.permute.xlu0 %537
        %v539 = vsel %vm247, %v532, 0.0
        %v540 = vsel %vm247, %v534, 0.0
        %v541 = vsel %vm247, %v536, 0.0
        %v542 = vsel %vm247, %v538, 0.0
        %543 = vrot.lane.b32.xlu0 %v527, 127
        %v544 = vpop.permute.xlu0 %543
        %545 = vrot.lane.b32.xlu0 %v528, 127
        %v546 = vpop.permute.xlu0 %545
        %547 = vrot.lane.b32.xlu0 %v529, 127
        %v548 = vpop.permute.xlu0 %547
        %549 = vrot.lane.b32.xlu0 %v530, 127
        %v550 = vpop.permute.xlu0 %549
        %v551 = vsel %vm248, %v544, 0.0
        %v552 = vsel %vm248, %v546, 0.0
        %v553 = vsel %vm248, %v548, 0.0
        %v554 = vsel %vm248, %v550, 0.0
        %556 = vset.pattern.permute.xlu0 0
        %557 = vperm.xlu0 %556, %v261
        %v558 = vpop.permute.xlu0 %557
        %561 = vset.pattern.permute.xlu0 0
        %562 = vperm.xlu0 %561, %v262
        %v563 = vpop.permute.xlu0 %562
        %566 = vset.pattern.permute.xlu0 0
        %567 = vperm.xlu0 %566, %v263
        %v568 = vpop.permute.xlu0 %567
        %571 = vset.pattern.permute.xlu0 0
        %572 = vperm.xlu0 %571, %v264
        %v573 = vpop.permute.xlu0 %572
        %v576 = vsel %vm313, %v253, 0
        %v579 = vsel %vm313, %v254, 0
        %v582 = vsel %vm313, %v255, 0
        %v585 = vsel %vm313, %v256, 0
        %587 = vmatpush.msra.mxu0 0.0
        %588 = vmatpush.msra.mxu0 0.0
        %589 = vmatpush.msra.mxu0 0.0
        %590 = vmatpush.msra.mxu0 0.0
        %591 = vmatpush.msra.mxu0 %v554
        %592 = vmatpush.msra.mxu0 %v553
        %593 = vmatpush.msra.mxu0 %v552
        %594 = vmatpush.msra.mxu0 %v551
        %595 = vmatpush.msra.mxu0 %v530
        %596 = vmatpush.msra.mxu0 %v529
        %597 = vmatpush.msra.mxu0 %v528
        %598 = vmatpush.msra.mxu0 %v527
        %599 = vmatpush.msra.mxu0 %v542
        %600 = vmatpush.msra.mxu0 %v541
        %601 = vmatpush.msra.mxu0 %v540
        %602 = vmatpush.msra.mxu0 %v539
        %603 = vmatmul.f32.gmra.mxu0 %v576
        %v604 = vpop.f32.mrf.mxu0
        %v605 = vadd.f32 %v558, %v604
        %606 = vmatmul.f32.gmra.mxu0 %v579
        %v607 = vpop.f32.mrf.mxu0
        %v608 = vadd.f32 %v563, %v607
        %609 = vmatmul.f32.gmra.mxu0 %v582
        %v610 = vpop.f32.mrf.mxu0
        %v611 = vadd.f32 %v568, %v610
        %612 = vmatmul.f32.gmra.mxu0 %v585
        %v613 = vpop.f32.mrf.mxu0
        %v614 = vadd.f32 %v573, %v613
        %615 = vdwg.mxu0
        %v616 = vadd.f32 %v265, %v605
        %v617 = vadd.f32 %v266, %v608
        %v618 = vadd.f32 %v267, %v611
        %v619 = vadd.f32 %v268, %v614
        %620 = vst [vmem:[%s244] sm:$0xff] %v616
        %621 = vst [vmem:[%s244 + $0x8] sm:$0xff] %v617
        %622 = vst [vmem:[%s244 + $0x10] sm:$0xff] %v618
        %623 = vst [vmem:[%s244 + $0x18] sm:$0xff] %v619
        %s624 = sand.u32 %s140, 1
        %s625 = scalar_lea.sflag [#allocation4], %s624
        %s626 = sand.u32 %s140, 1
        %s627 = smul.addr %s626, 32
        %s628 = scalar_lea.vmem [#allocation5], %s627
        // Predicated region
        $region45: #{tpu_custom_call.1} parent=39 // pred_check
          %p629 = pneg %p150
        $region46: #{tpu_custom_call.1} parent=39 // pred_check_branch
          %631 = sbr.rel (%p629) target = $region48
        $region47: #{tpu_custom_call.1} parent=39 // pred_region
          %633 = vsyncadd %s625, 0
          %s634 = smul.addr %s22, 4
          %s635 = smul.addr %s634, 8
          %s636 = scalar_lea.hbm %s5, %s635
          %s637 = sshll.u32 %s628, 4
          %s638 = int_to_ptr.vmem [resolvable:$true] %s637
          %s639 = sshll.u32 %s636, 4
          %s640 = int_to_ptr.hbm [resolvable:$true] %s639
          %645 = dma.vmem_to_hbm [thread:$0]  %s638, 512, %s640, %s625, 128, 128, 8
        $region48: #{tpu_custom_call.1} parent=39 // pred_fallthru
          _
      $region40: #{tpu_custom_call.1} parent=5 // pred_fallthru
        _
      %p646 = scmp.le.s32.totalorder 2, %s17
      // Predicated region
      $region49: #{tpu_custom_call.1} parent=5 // pred_check
        %p647 = pneg %p646
      $region50: #{tpu_custom_call.1} parent=5 // pred_check_branch
        %649 = sbr.rel (%p647) target = $region52
      $region51: #{tpu_custom_call.1} parent=5 // pred_region
        %s650 = ssub.s32 %s17, 2
        // Predicated region
        $region53: #{tpu_custom_call.1} parent=51 // pred_check
          %p651 = pneg %p156
        $region54: #{tpu_custom_call.1} parent=51 // pred_check_branch
          %653 = sbr.rel (%p651) target = $region56
        $region55: #{tpu_custom_call.1} parent=51 // pred_region
          %s654 = sand.u32 %s141, 1
          %s655 = scalar_lea.sflag [#allocation4], %s654
          %s656 = sand.u32 %s141, 1
          %s657 = smul.addr %s656, 32
          %s658 = scalar_lea.vmem [#allocation5], %s657
          %660 = dma.done %s655, 512
        $region56: #{tpu_custom_call.1} parent=51 // pred_fallthru
          _
      $region52: #{tpu_custom_call.1} parent=5 // pred_fallthru
        _
    $region6: #{tpu_custom_call.1} parent=1 // loop_footer
      %s21 = sadd.s32 1, %s17
    $region7: #{tpu_custom_call.1} parent=1 // loop_footer_branch
      %16 = sbr.rel target = $region3
    $region8: #{tpu_custom_call.1} parent=1 // loop_exit
      _
    %661 = vsyncpa [#allocation3], 1
    %s662 = scalar_lea.sflag [#allocation3], 1
    %663 = vsyncpa %s662, 1
    %664 = vsyncpa [#allocation4], 1
    %s665 = scalar_lea.sflag [#allocation4], 1
    %666 = vsyncpa %s665, 1

</llo_original>
